<compile_context>
chip_gen: v6e
topology: v6e:2x2x1
jax: 0.10.0
libtpu: 0.0.40
codegen_flags: <defaults>
</compile_context>

<pallas_src>
import functools

import jax
import jax.numpy as jnp
from jax.experimental import pallas as pl
from jax.experimental.pallas import tpu as pltpu

_LANE = 128
_SUBLANE = 8
_TARGET_BLOCK_BYTES = 512 * 1024  # ~512 KiB per input block (x2 double-buffered)


def _round_up(x, m):
    return (x + m - 1) // m * m


def _partial_sum_kernel(x_ref, o_ref, *, blk_rows, n_rows):
    """Each grid step writes an (8, 128) partial sum of its (blk_rows, 128) block."""
    i = pl.program_id(0)

    def block_sum(x):
        # (blk_rows, 128) -> (blk_rows//8, 8, 128): vadd chain across vregs (VALU only).
        return jnp.sum(x.reshape(-1, _SUBLANE, _LANE), axis=0)

    if n_rows % blk_rows == 0:
        # All blocks are full: steady state is one vld + one vadd per vreg.
        o_ref[...] = block_sum(x_ref[...].astype(jnp.float32))
    else:
        last = pl.num_programs(0) - 1

        @pl.when(i < last)
        def _():
            o_ref[...] = block_sum(x_ref[...].astype(jnp.float32))

        @pl.when(i == last)
        def _():
            # Ragged tail: rows >= n_rows contain undefined (out-of-bounds) data.
            x = x_ref[...].astype(jnp.float32)
            row = jax.lax.broadcasted_iota(jnp.int32, x.shape, 0) + i * blk_rows
            o_ref[...] = block_sum(jnp.where(row < n_rows, x, 0.0))


def wgan_g_loss(fake_judge, real_judge=None):
    """Equivalent of Loss.forward: returns -fake_judge.mean() as an f32 scalar."""
    del real_judge  # accepted for signature parity; unused, as in the module
    n_total = fake_judge.size
    if n_total == 0:
        return jnp.float32(jnp.nan)  # matches torch.mean of an empty tensor

    # Flatten in native dtype (cast to f32 happens inside the kernel, for free).
    flat = fake_judge.reshape(-1)
    rem = flat.size % _LANE
    if rem:
        # Rare path (size not a multiple of 128): minimal zero pad; zeros add 0 to the sum.
        flat = jnp.pad(flat, (0, _LANE - rem))
    x2d = flat.reshape(-1, _LANE)  # metadata-only reshape when no pad was needed
    n_rows = x2d.shape[0]

    # Pick a large block (~512 KiB) with a row count that is a multiple of 8.
    bytes_per_row = _LANE * x2d.dtype.itemsize
    max_rows = max(
        _SUBLANE, (_TARGET_BLOCK_BYTES // bytes_per_row) // _SUBLANE * _SUBLANE
    )
    blk_rows = min(max_rows, _round_up(n_rows, _SUBLANE))
    n_blocks = pl.cdiv(n_rows, blk_rows)

    partials = pl.pallas_call(
        functools.partial(_partial_sum_kernel, blk_rows=blk_rows, n_rows=n_rows),
        out_shape=jax.ShapeDtypeStruct((n_blocks * _SUBLANE, _LANE), jnp.float32),
        grid=(n_blocks,),
        in_specs=[pl.BlockSpec((blk_rows, _LANE), lambda i: (i, 0))],
        out_specs=pl.BlockSpec((_SUBLANE, _LANE), lambda i: (i, 0)),
        compiler_params=pltpu.CompilerParams(
            # Independent partial sums -> shards across both TensorCores on v7x.
            dimension_semantics=("parallel",)
        ),
    )(x2d)

    # Tiny epilogue: combine the few per-block partials, normalize, negate.
    return -(jnp.sum(partials) / jnp.float32(n_total))


if __name__ == "__main__":
    key = jax.random.PRNGKey(0)
    k_fake, k_real = jax.random.split(key)
    # Judge (critic) outputs for a small batch (NCHW like the PyTorch module sees).
    fake_judge = jax.random.normal(k_fake, (2, 4, 16, 16), dtype=jnp.float32)
    real_judge = jax.random.normal(k_real, (2, 4, 16, 16), dtype=jnp.float32)

    loss = wgan_g_loss(fake_judge, real_judge)
    jax.block_until_ready(loss)

    ref = -jnp.mean(fake_judge)
    assert jnp.allclose(loss, ref, atol=1e-5, rtol=1e-5), (loss, ref)
    print("KERNEL_OK")
</pallas_src>

<mosaic_0001>
module attributes {stable_mosaic.version = 11 : i64} {
  func.func @_partial_sum_kernel(%arg0: i32, %arg1: memref<16x128xf32, #tpu.memory_space<vmem>>, %arg2: memref<8x128xf32, #tpu.memory_space<vmem>>) attributes {dimension_semantics = [#tpu.dimension_semantics<parallel>], iteration_bounds = array<i64: 1>, scalar_prefetch = 0 : i64, scratch_operands = 0 : i64, tpu.core_type = #tpu.core_type<tc>, window_params = [{transform_indices = @transform_0, window_bounds = array<i64: 16, 128>}, {transform_indices = @transform_1, window_bounds = array<i64: 8, 128>}]} {
    %c0 = arith.constant 0 : index
    %c0_0 = arith.constant 0 : index
    %0 = vector.load %arg1[%c0, %c0_0] : memref<16x128xf32, #tpu.memory_space<vmem>>, vector<16x128xf32>
    %1 = vector.shape_cast %0 : vector<16x128xf32> to vector<2x8x128xf32>
    %cst = arith.constant dense<0.000000e+00> : vector<8x128xf32>
    %2 = vector.multi_reduction <add>, %1, %cst [0] : vector<2x8x128xf32> to vector<8x128xf32>
    %c0_1 = arith.constant 0 : index
    %c0_2 = arith.constant 0 : index
    %3 = vector.load %arg2[%c0_1, %c0_2] : memref<8x128xf32, #tpu.memory_space<vmem>>, vector<8x128xf32>
    tpu.vector_store %arg2[%c0_1, %c0_2], %2 {strides = array<i32>} : memref<8x128xf32, #tpu.memory_space<vmem>>, vector<8x128xf32>,
    return
  }
  func.func @transform_0(%arg0: i32) -> (i32, i32) {
    %c0_i32 = arith.constant 0 : i32
    %c0_i32_0 = arith.constant 0 : i32
    return %arg0, %c0_i32 : i32, i32
  }
  func.func @transform_1(%arg0: i32) -> (i32, i32) {
    %c0_i32 = arith.constant 0 : i32
    %c0_i32_0 = arith.constant 0 : i32
    return %arg0, %c0_i32 : i32, i32
  }
}

</mosaic_0001>

<llo_original>
// kernel: tpu_custom_call.1
$region0: #{tpu_custom_call.1}
  #allocation0 [shape = 'u32[]', space=smem, size = 0x4, offset = 0x4, fixed_abs, tag = 'smem constant byte address 0x4 - core index']
  #allocation1 [shape = 'u32[144,128]{1,0:T(1,128)}', space=vmem, size = 0x12000, scoped, tag = 'internal scratch']
  %s0 = inlined_call_operand.hbm [shape: f32[16,128], index: 0, kind: input, shape index: {}]
  %s1 = inlined_call_operand.hbm [shape: f32[8,128], index: 1, kind: output, shape index: {}]
  %s2 = sld [smem:[#allocation0]]
  $region18: #{tpu_custom_call.1} parent=0
    _
  %s4 = ssub.s32 1, %s2
  %s5 = scalar_select 0, %s4, %s2
  $region1: #{tpu_custom_call.1} parent=0
    #allocation2 [shape = 'u8[8192]{0}', space=vmem, size = 0x2000, scoped, tag = 'input window, operand 0, single buffered']
    #allocation3 [shape = 's32[1]{0}', space=sflag, size = 0x4, scoped, tag = 'scoped memory for tpu_custom_call.1']
    #allocation4 [shape = 's32[1]{0}', space=sflag, size = 0x4, scoped, tag = 'scoped memory for tpu_custom_call.1']
    #allocation5 [shape = 'u8[4096]{0}', space=vmem, size = 0x1000, scoped, tag = 'output window, operand 0, single buffered']
    %6 = vsyncpa [#allocation3], 0
    %7 = vsyncpa [#allocation4], 0
    // Predicated region
    $region2: #{tpu_custom_call.1} parent=1 // pred_check
      _
    $region3: #{tpu_custom_call.1} parent=1 // pred_check_branch
      %9 = sbr.rel (0) target = $region5
    $region4: #{tpu_custom_call.1} parent=1 // pred_region
      %s11 = ssub.s32 256, 256
      %12 = vsyncadd [#allocation3], %s11
      %s13 = sshll.u32 [#allocation2], 4
      %s14 = int_to_ptr.vmem [resolvable:$true] %s13
      %19 = dma.hbm_to_vmem [thread:$0]  %s0, 256, %s14, [#allocation3], 128, 128, 8
    $region5: #{tpu_custom_call.1} parent=1 // pred_fallthru
      _
    // Predicated region
    $region6: #{tpu_custom_call.1} parent=1 // pred_check
      _
    $region7: #{tpu_custom_call.1} parent=1 // pred_check_branch
      %21 = sbr.rel (0) target = $region9
    $region8: #{tpu_custom_call.1} parent=1 // pred_region
      %22 = dma.done [#allocation3], 256
    $region9: #{tpu_custom_call.1} parent=1 // pred_fallthru
      _
    %v23 = vld [vmem:[#allocation2] sm:$0xff]
    %v24 = vld [vmem:[#allocation2 + $0x8] sm:$0xff]
    %v25 = vadd.f32 %v23, %v24
    %26 = vst [vmem:[#allocation5] sm:$0xff] %v25
    // Predicated region
    $region10: #{tpu_custom_call.1} parent=1 // pred_check
      _
    $region11: #{tpu_custom_call.1} parent=1 // pred_check_branch
      %28 = sbr.rel (0) target = $region13
    $region12: #{tpu_custom_call.1} parent=1 // pred_region
      %s30 = ssub.s32 128, 128
      %31 = vsyncadd [#allocation4], %s30
      %s33 = sshll.u32 [#allocation5], 4
      %s34 = int_to_ptr.vmem [resolvable:$true] %s33
      %36 = dma.vmem_to_hbm [thread:$0]  %s34, 128, %s1, [#allocation4]
    $region13: #{tpu_custom_call.1} parent=1 // pred_fallthru
      _
    // Predicated region
    $region14: #{tpu_custom_call.1} parent=1 // pred_check
      _
    $region15: #{tpu_custom_call.1} parent=1 // pred_check_branch
      %38 = sbr.rel (0) target = $region17
    $region16: #{tpu_custom_call.1} parent=1 // pred_region
      %39 = dma.done [#allocation4], 128
    $region17: #{tpu_custom_call.1} parent=1 // pred_fallthru
      _
    %40 = vsyncpa [#allocation3], 1
    %41 = vsyncpa [#allocation4], 1

</llo_original>
